<compile_context>
chip_gen: v5e
topology: v5e:2x2
jax: 0.10.0
libtpu: 0.0.40
codegen_flags: <defaults>
</compile_context>

<pallas_src>
import functools

import jax
import jax.numpy as jnp
from jax.experimental import pallas as pl
from jax.experimental.pallas import tpu as pltpu


def _round_up(n, m):
    return ((n + m - 1) // m) * m


def dqn_kernel(x_ref, w1_ref, b1_ref, w2_ref, b2_ref, w3_ref, b3_ref, o_ref):
    # x tile: (TB, 4) f32. Weights/biases are fully VMEM-resident across the
    # whole batch loop (constant index_map).
    x = x_ref[...]

    # ---- Layer 1 on the VPU: K=4 would be almost entirely zero padding on
    # the MXU, so do 4 unrolled broadcast-FMAs instead. ----
    acc = x[:, 0:1] * w1_ref[0:1, :]                       # (TB, 128) f32
    for k in range(1, 4):
        acc = acc + x[:, k:k + 1] * w1_ref[k:k + 1, :]
    h1 = jnp.tanh(acc + b1_ref[...])                       # f32 tanh (EUP)

    # ---- Layer 2: 128x128 on the MXU, bf16 operands, f32 accumulate. ----
    h2 = jnp.tanh(
        jnp.dot(h1.astype(jnp.bfloat16), w2_ref[...],
                preferred_element_type=jnp.float32)
        + b2_ref[...]
    )

    # ---- Layer 3: 128x3 on the MXU, bf16 operands, f32 accumulate. ----
    out = (
        jnp.dot(h2.astype(jnp.bfloat16), w3_ref[...],
                preferred_element_type=jnp.float32)
        + b3_ref[...]
    )
    o_ref[...] = out.astype(o_ref.dtype)                   # (TB, 3)


@functools.partial(jax.jit, static_argnames=("tb",))
def dqn_forward(x, params, *, tb=512):
    """Fused DQN forward. x: (B, 4) f32 -> (B, 3) f32."""
    w1, b1, w2, b2, w3, b3 = params
    B = x.shape[0]

    # Batch tile: multiple of 8 sublanes, capped at `tb` (~512 already reaches
    # ~85% of HBM roofline and fits comfortably in v7x's smaller VMEM).
    TB = min(tb, _round_up(B, 8))
    B_pad = _round_up(B, TB)
    if B_pad != B:
        x = jnp.pad(x, ((0, B_pad - B), (0, 0)))

    resident = lambda a: pl.BlockSpec(a.shape, lambda i: (0,) * a.ndim)

    out = pl.pallas_call(
        dqn_kernel,
        out_shape=jax.ShapeDtypeStruct((B_pad, 3), jnp.float32),
        grid=(B_pad // TB,),
        in_specs=[
            pl.BlockSpec((TB, 4), lambda i: (i, 0)),   # x: pipelined over batch
            resident(w1), resident(b1),
            resident(w2), resident(b2),
            resident(w3), resident(b3),
        ],
        out_specs=pl.BlockSpec((TB, 3), lambda i: (i, 0)),
        compiler_params=pltpu.CompilerParams(
            # Batch tiles are independent -> shard across v7x's 2 TensorCores.
            dimension_semantics=("parallel",),
        ),
    )(x, w1, b1, w2, b2, w3, b3)
    return out[:B]


def init_params(key):
    """Deterministic init mirroring nn.Linear defaults (U[-1/sqrt(fan_in), +]).

    Weights are stored (in_features, out_features) so the kernel computes
    x @ W + b directly (== PyTorch's x @ W^T + b).
    Layer-1 weights stay f32 (VPU path); layers 2/3 are stored bf16 (native
    MXU dtype, halves weight DMA)."""
    def linear(key, fan_in, fan_out, w_dtype):
        kw, kb = jax.random.split(key)
        bound = 1.0 / jnp.sqrt(fan_in)
        w = jax.random.uniform(kw, (fan_in, fan_out), jnp.float32,
                               -bound, bound).astype(w_dtype)
        b = jax.random.uniform(kb, (1, fan_out), jnp.float32, -bound, bound)
        return w, b

    k1, k2, k3 = jax.random.split(key, 3)
    w1, b1 = linear(k1, 4, 128, jnp.float32)
    w2, b2 = linear(k2, 128, 128, jnp.bfloat16)
    w3, b3 = linear(k3, 128, 3, jnp.bfloat16)
    return (w1, b1, w2, b2, w3, b3)


def dqn_reference(x, params):
    """Pure-JAX reference (weights upcast to f32)."""
    w1, b1, w2, b2, w3, b3 = params
    h1 = jnp.tanh(x @ w1 + b1)
    h2 = jnp.tanh(h1 @ w2.astype(jnp.float32) + b2)
    return h2 @ w3.astype(jnp.float32) + b3


if __name__ == "__main__":
    key = jax.random.PRNGKey(0)
    kp, kx1, kx2 = jax.random.split(key, 3)
    params = init_params(kp)

    # Small single-tile case (typical env-step batch).
    B = 8
    x = jax.random.normal(kx1, (B, 4), jnp.float32)
    out = jax.block_until_ready(dqn_forward(x, params))
    ref = dqn_reference(x, params)
    assert out.shape == (B, 3), out.shape
    err = jnp.max(jnp.abs(out - ref))
    # bf16 matmul operands (f32 accumulate) -> allow bf16-level rounding error.
    assert err < 5e-2, f"max abs err {err}"

    # Non-aligned, multi-tile case to exercise padding + pipelined batch grid.
    B2 = 300
    x2 = jax.random.normal(kx2, (B2, 4), jnp.float32)
    out2 = jax.block_until_ready(dqn_forward(x2, params, tb=64))
    ref2 = dqn_reference(x2, params)
    assert out2.shape == (B2, 3), out2.shape
    err2 = jnp.max(jnp.abs(out2 - ref2))
    assert err2 < 5e-2, f"max abs err {err2}"

    print("KERNEL_OK")
</pallas_src>

<mosaic_0001>
module attributes {stable_mosaic.version = 11 : i64} {
  func.func @dqn_kernel(%arg0: i32, %arg1: memref<8x4xf32, #tpu.memory_space<vmem>>, %arg2: memref<4x128xf32, #tpu.memory_space<vmem>>, %arg3: memref<1x128xf32, #tpu.memory_space<vmem>>, %arg4: memref<128x128xbf16, #tpu.memory_space<vmem>>, %arg5: memref<1x128xf32, #tpu.memory_space<vmem>>, %arg6: memref<128x3xbf16, #tpu.memory_space<vmem>>, %arg7: memref<1x3xf32, #tpu.memory_space<vmem>>, %arg8: memref<8x3xf32, #tpu.memory_space<vmem>>) attributes {dimension_semantics = [#tpu.dimension_semantics<parallel>], iteration_bounds = array<i64: 1>, scalar_prefetch = 0 : i64, scratch_operands = 0 : i64, tpu.core_type = #tpu.core_type<tc>, window_params = [{transform_indices = @transform_0, window_bounds = array<i64: 8, 4>}, {pipeline_mode = #tpu.pipeline_mode<synchronous>, transform_indices = @transform_1, window_bounds = array<i64: 4, 128>}, {pipeline_mode = #tpu.pipeline_mode<synchronous>, transform_indices = @transform_2, window_bounds = array<i64: 1, 128>}, {pipeline_mode = #tpu.pipeline_mode<synchronous>, transform_indices = @transform_3, window_bounds = array<i64: 128, 128>}, {pipeline_mode = #tpu.pipeline_mode<synchronous>, transform_indices = @transform_4, window_bounds = array<i64: 1, 128>}, {pipeline_mode = #tpu.pipeline_mode<synchronous>, transform_indices = @transform_5, window_bounds = array<i64: 128, 3>}, {pipeline_mode = #tpu.pipeline_mode<synchronous>, transform_indices = @transform_6, window_bounds = array<i64: 1, 3>}, {transform_indices = @transform_7, window_bounds = array<i64: 8, 3>}]} {
    %c0 = arith.constant 0 : index
    %c0_0 = arith.constant 0 : index
    %0 = vector.load %arg1[%c0, %c0_0] : memref<8x4xf32, #tpu.memory_space<vmem>>, vector<8x4xf32>
    %1 = vector.extract_strided_slice %0 {offsets = [0, 0], sizes = [8, 1], strides = [1, 1]} : vector<8x4xf32> to vector<8x1xf32>
    %c0_1 = arith.constant 0 : index
    %c0_2 = arith.constant 0 : index
    %2 = vector.load %arg2[%c0_1, %c0_2] : memref<4x128xf32, #tpu.memory_space<vmem>>, vector<1x128xf32>
    %3 = vector.broadcast %1 : vector<8x1xf32> to vector<8x128xf32>
    %4 = vector.broadcast %2 : vector<1x128xf32> to vector<8x128xf32>
    %5 = arith.mulf %3, %4 : vector<8x128xf32>
    %6 = vector.extract_strided_slice %0 {offsets = [0, 1], sizes = [8, 1], strides = [1, 1]} : vector<8x4xf32> to vector<8x1xf32>
    %c1 = arith.constant 1 : index
    %c0_3 = arith.constant 0 : index
    %7 = vector.load %arg2[%c1, %c0_3] : memref<4x128xf32, #tpu.memory_space<vmem>>, vector<1x128xf32>
    %8 = vector.broadcast %6 : vector<8x1xf32> to vector<8x128xf32>
    %9 = vector.broadcast %7 : vector<1x128xf32> to vector<8x128xf32>
    %10 = arith.mulf %8, %9 : vector<8x128xf32>
    %11 = arith.addf %5, %10 : vector<8x128xf32>
    %12 = vector.extract_strided_slice %0 {offsets = [0, 2], sizes = [8, 1], strides = [1, 1]} : vector<8x4xf32> to vector<8x1xf32>
    %c2 = arith.constant 2 : index
    %c0_4 = arith.constant 0 : index
    %13 = vector.load %arg2[%c2, %c0_4] : memref<4x128xf32, #tpu.memory_space<vmem>>, vector<1x128xf32>
    %14 = vector.broadcast %12 : vector<8x1xf32> to vector<8x128xf32>
    %15 = vector.broadcast %13 : vector<1x128xf32> to vector<8x128xf32>
    %16 = arith.mulf %14, %15 : vector<8x128xf32>
    %17 = arith.addf %11, %16 : vector<8x128xf32>
    %18 = vector.extract_strided_slice %0 {offsets = [0, 3], sizes = [8, 1], strides = [1, 1]} : vector<8x4xf32> to vector<8x1xf32>
    %c3 = arith.constant 3 : index
    %c0_5 = arith.constant 0 : index
    %19 = vector.load %arg2[%c3, %c0_5] : memref<4x128xf32, #tpu.memory_space<vmem>>, vector<1x128xf32>
    %20 = vector.broadcast %18 : vector<8x1xf32> to vector<8x128xf32>
    %21 = vector.broadcast %19 : vector<1x128xf32> to vector<8x128xf32>
    %22 = arith.mulf %20, %21 : vector<8x128xf32>
    %23 = arith.addf %17, %22 : vector<8x128xf32>
    %c0_6 = arith.constant 0 : index
    %c0_7 = arith.constant 0 : index
    %24 = vector.load %arg3[%c0_6, %c0_7] : memref<1x128xf32, #tpu.memory_space<vmem>>, vector<1x128xf32>
    %25 = vector.broadcast %24 : vector<1x128xf32> to vector<8x128xf32>
    %26 = arith.addf %23, %25 : vector<8x128xf32>
    %27 = math.tanh %26 : vector<8x128xf32>
    %28 = arith.truncf %27 : vector<8x128xf32> to vector<8x128xbf16>
    %c0_8 = arith.constant 0 : index
    %c0_9 = arith.constant 0 : index
    %29 = vector.load %arg4[%c0_8, %c0_9] : memref<128x128xbf16, #tpu.memory_space<vmem>>, vector<128x128xbf16>
    %cst = arith.constant dense<0.000000e+00> : vector<8x128xf32>
    %30 = tpu.matmul %28, %29, %cst {dimension_numbers = #tpu.dot_dimension_numbers<[1], [0], [0], [1], [0, 0, 1, 1], [], []>} : vector<8x128xbf16>, vector<128x128xbf16>, vector<8x128xf32> -> vector<8x128xf32>
    %c0_10 = arith.constant 0 : index
    %c0_11 = arith.constant 0 : index
    %31 = vector.load %arg5[%c0_10, %c0_11] : memref<1x128xf32, #tpu.memory_space<vmem>>, vector<1x128xf32>
    %32 = vector.broadcast %31 : vector<1x128xf32> to vector<8x128xf32>
    %33 = arith.addf %30, %32 : vector<8x128xf32>
    %34 = math.tanh %33 : vector<8x128xf32>
    %35 = arith.truncf %34 : vector<8x128xf32> to vector<8x128xbf16>
    %c0_12 = arith.constant 0 : index
    %c0_13 = arith.constant 0 : index
    %36 = vector.load %arg6[%c0_12, %c0_13] : memref<128x3xbf16, #tpu.memory_space<vmem>>, vector<128x3xbf16>
    %cst_14 = arith.constant dense<0.000000e+00> : vector<8x3xf32>
    %37 = tpu.matmul %35, %36, %cst_14 {dimension_numbers = #tpu.dot_dimension_numbers<[1], [0], [0], [1], [0, 0, 1, 1], [], []>} : vector<8x128xbf16>, vector<128x3xbf16>, vector<8x3xf32> -> vector<8x3xf32>
    %c0_15 = arith.constant 0 : index
    %c0_16 = arith.constant 0 : index
    %38 = vector.load %arg7[%c0_15, %c0_16] : memref<1x3xf32, #tpu.memory_space<vmem>>, vector<1x3xf32>
    %39 = vector.broadcast %38 : vector<1x3xf32> to vector<8x3xf32>
    %40 = arith.addf %37, %39 : vector<8x3xf32>
    %c0_17 = arith.constant 0 : index
    %c0_18 = arith.constant 0 : index
    %41 = vector.load %arg8[%c0_17, %c0_18] : memref<8x3xf32, #tpu.memory_space<vmem>>, vector<8x3xf32>
    tpu.vector_store %arg8[%c0_17, %c0_18], %40 {strides = array<i32>} : memref<8x3xf32, #tpu.memory_space<vmem>>, vector<8x3xf32>,
    return
  }
  func.func @transform_0(%arg0: i32) -> (i32, i32) {
    %c0_i32 = arith.constant 0 : i32
    %c0_i32_0 = arith.constant 0 : i32
    return %arg0, %c0_i32 : i32, i32
  }
  func.func @transform_1(%arg0: i32) -> (i32, i32) {
    %c0_i32 = arith.constant 0 : i32
    %c0_i32_0 = arith.constant 0 : i32
    %c0_i32_1 = arith.constant 0 : i32
    return %c0_i32, %c0_i32_0 : i32, i32
  }
  func.func @transform_2(%arg0: i32) -> (i32, i32) {
    %c0_i32 = arith.constant 0 : i32
    %c0_i32_0 = arith.constant 0 : i32
    %c0_i32_1 = arith.constant 0 : i32
    return %c0_i32, %c0_i32_0 : i32, i32
  }
  func.func @transform_3(%arg0: i32) -> (i32, i32) {
    %c0_i32 = arith.constant 0 : i32
    %c0_i32_0 = arith.constant 0 : i32
    %c0_i32_1 = arith.constant 0 : i32
    return %c0_i32, %c0_i32_0 : i32, i32
  }
  func.func @transform_4(%arg0: i32) -> (i32, i32) {
    %c0_i32 = arith.constant 0 : i32
    %c0_i32_0 = arith.constant 0 : i32
    %c0_i32_1 = arith.constant 0 : i32
    return %c0_i32, %c0_i32_0 : i32, i32
  }
  func.func @transform_5(%arg0: i32) -> (i32, i32) {
    %c0_i32 = arith.constant 0 : i32
    %c0_i32_0 = arith.constant 0 : i32
    %c0_i32_1 = arith.constant 0 : i32
    return %c0_i32, %c0_i32_0 : i32, i32
  }
  func.func @transform_6(%arg0: i32) -> (i32, i32) {
    %c0_i32 = arith.constant 0 : i32
    %c0_i32_0 = arith.constant 0 : i32
    %c0_i32_1 = arith.constant 0 : i32
    return %c0_i32, %c0_i32_0 : i32, i32
  }
  func.func @transform_7(%arg0: i32) -> (i32, i32) {
    %c0_i32 = arith.constant 0 : i32
    %c0_i32_0 = arith.constant 0 : i32
    return %arg0, %c0_i32 : i32, i32
  }
}

</mosaic_0001>

<llo_original>
// kernel: dqn_forward.1
$region0: #{dqn_forward.1}
  #allocation0 [shape = 'u32[]', space=smem, size = 0x4, offset = 0x4, fixed_abs, tag = 'smem constant byte address 0x4 - core index']
  #allocation1 [shape = 'u32[72,128]{1,0:T(1,128)}', space=vmem, size = 0x9000, scoped, tag = 'internal scratch']
  %s0 = inlined_call_operand.vmem [shape: f32[8,4], index: 0, kind: input, shape index: {}]
  %s1 = inlined_call_operand.vmem [shape: f32[4,128], index: 1, kind: input, shape index: {}]
  %s2 = inlined_call_operand.vmem [shape: f32[1,128], index: 2, kind: input, shape index: {}]
  %s3 = inlined_call_operand.vmem [shape: bf16[128,128], index: 3, kind: input, shape index: {}]
  %s4 = inlined_call_operand.vmem [shape: f32[1,128], index: 4, kind: input, shape index: {}]
  %s5 = inlined_call_operand.vmem [shape: bf16[128,3], index: 5, kind: input, shape index: {}]
  %s6 = inlined_call_operand.vmem [shape: f32[1,3], index: 6, kind: input, shape index: {}]
  %s7 = inlined_call_operand.vmem [shape: f32[8,3], index: 7, kind: output, shape index: {}]
  %s8 = sld [smem:[#allocation0]]
  $region38: #{dqn_forward.1} parent=0
    _
  %s10 = ssub.s32 1, %s8
  %s11 = scalar_select 0, %s10, %s8
  // Predicated region
  $region2: #{dqn_forward.1} parent=0 // pred_check
    _
  $region3: #{dqn_forward.1} parent=0 // pred_check_branch
    %13 = sbr.rel (0) target = $region5
  $region4: #{dqn_forward.1} parent=0 // pred_region
    _
  $region5: #{dqn_forward.1} parent=0 // pred_fallthru
    _
  // Predicated region
  $region6: #{dqn_forward.1} parent=0 // pred_check
    _
  $region7: #{dqn_forward.1} parent=0 // pred_check_branch
    %15 = sbr.rel (0) target = $region9
  $region8: #{dqn_forward.1} parent=0 // pred_region
    _
  $region9: #{dqn_forward.1} parent=0 // pred_fallthru
    _
  // Predicated region
  $region10: #{dqn_forward.1} parent=0 // pred_check
    _
  $region11: #{dqn_forward.1} parent=0 // pred_check_branch
    %17 = sbr.rel (0) target = $region13
  $region12: #{dqn_forward.1} parent=0 // pred_region
    _
  $region13: #{dqn_forward.1} parent=0 // pred_fallthru
    _
  // Predicated region
  $region14: #{dqn_forward.1} parent=0 // pred_check
    _
  $region15: #{dqn_forward.1} parent=0 // pred_check_branch
    %19 = sbr.rel (0) target = $region17
  $region16: #{dqn_forward.1} parent=0 // pred_region
    _
  $region17: #{dqn_forward.1} parent=0 // pred_fallthru
    _
  // Predicated region
  $region18: #{dqn_forward.1} parent=0 // pred_check
    _
  $region19: #{dqn_forward.1} parent=0 // pred_check_branch
    %21 = sbr.rel (0) target = $region21
  $region20: #{dqn_forward.1} parent=0 // pred_region
    _
  $region21: #{dqn_forward.1} parent=0 // pred_fallthru
    _
  // Predicated region
  $region22: #{dqn_forward.1} parent=0 // pred_check
    _
  $region23: #{dqn_forward.1} parent=0 // pred_check_branch
    %23 = sbr.rel (0) target = $region25
  $region24: #{dqn_forward.1} parent=0 // pred_region
    _
  $region25: #{dqn_forward.1} parent=0 // pred_fallthru
    _
  // Predicated region
  $region26: #{dqn_forward.1} parent=0 // pred_check
    _
  $region27: #{dqn_forward.1} parent=0 // pred_check_branch
    %25 = sbr.rel (0) target = $region29
  $region28: #{dqn_forward.1} parent=0 // pred_region
    _
  $region29: #{dqn_forward.1} parent=0 // pred_fallthru
    _
  %v26 = vld [vmem:[%s0] sm:$0xff]
  %v27 = vld [vmem:[%s1] sm:$0x1]
  %29 = vset.pattern.permute.xlu0 0
  %30 = vperm.xlu0 %29, %v26
  %v31 = vpop.permute.xlu0 %30
  %v33 = vperm.slane %v27, 0
  %v34 = vmul.f32 %v31, %v33
  %v35 = vld [vmem:[%s1 + $0x1] sm:$0x1]
  %36 = vset.pattern.permute.xlu0 1
  %37 = vperm.xlu0 %36, %v26
  %v38 = vpop.permute.xlu0 %37
  %v40 = vperm.slane %v35, 0
  %v41 = vmul.f32 %v38, %v40
  %v42 = vadd.f32 %v34, %v41
  %v43 = vld [vmem:[%s1 + $0x2] sm:$0x1]
  %44 = vset.pattern.permute.xlu0 2
  %45 = vperm.xlu0 %44, %v26
  %v46 = vpop.permute.xlu0 %45
  %v48 = vperm.slane %v43, 0
  %v49 = vmul.f32 %v46, %v48
  %v50 = vadd.f32 %v42, %v49
  %v51 = vld [vmem:[%s1 + $0x3] sm:$0x1]
  %52 = vset.pattern.permute.xlu0 3
  %53 = vperm.xlu0 %52, %v26
  %v54 = vpop.permute.xlu0 %53
  %v56 = vperm.slane %v51, 0
  %v57 = vmul.f32 %v54, %v56
  %v58 = vadd.f32 %v50, %v57
  %v59 = vld [vmem:[%s2] sm:$0x1]
  %v61 = vperm.slane %v59, 0
  %v63 = vadd.f32 %v58, %v61
  %v64 = vtanh.pop %v63
  %v65 = vpack.c.bf16 %v64, %v64
  %v66 = vld [vmem:[%s3] sm:$0xf]
  %v67 = vld [vmem:[%s3 + $0x4] sm:$0xf]
  %v68 = vld [vmem:[%s3 + $0x8] sm:$0xf]
  %v69 = vld [vmem:[%s3 + $0xc] sm:$0xf]
  %v70 = vld [vmem:[%s3 + $0x10] sm:$0xf]
  %v71 = vld [vmem:[%s3 + $0x14] sm:$0xf]
  %v72 = vld [vmem:[%s3 + $0x18] sm:$0xf]
  %v73 = vld [vmem:[%s3 + $0x1c] sm:$0xf]
  %v74 = vld [vmem:[%s3 + $0x20] sm:$0xf]
  %v75 = vld [vmem:[%s3 + $0x24] sm:$0xf]
  %v76 = vld [vmem:[%s3 + $0x28] sm:$0xf]
  %v77 = vld [vmem:[%s3 + $0x2c] sm:$0xf]
  %v78 = vld [vmem:[%s3 + $0x30] sm:$0xf]
  %v79 = vld [vmem:[%s3 + $0x34] sm:$0xf]
  %v80 = vld [vmem:[%s3 + $0x38] sm:$0xf]
  %v81 = vld [vmem:[%s3 + $0x3c] sm:$0xf]
  %v82 = vld [vmem:[%s4] sm:$0x1]
  %v84 = vperm.slane %v82, 0
  %v102 = vunpack.c.l.b16 %v66
  %v103 = vunpack.c.l.b16 %v67
  %v104 = vunpack.c.l.b16 %v68
  %v105 = vunpack.c.l.b16 %v69
  %v106 = vunpack.c.l.b16 %v70
  %v107 = vunpack.c.l.b16 %v71
  %v108 = vunpack.c.l.b16 %v72
  %v109 = vunpack.c.l.b16 %v73
  %v110 = vunpack.c.l.b16 %v74
  %v111 = vunpack.c.l.b16 %v75
  %v112 = vunpack.c.l.b16 %v76
  %v113 = vunpack.c.l.b16 %v77
  %v114 = vunpack.c.l.b16 %v78
  %v115 = vunpack.c.l.b16 %v79
  %v116 = vunpack.c.l.b16 %v80
  %v117 = vunpack.c.l.b16 %v81
  %v118 = vpack.c.b16 %v103, %v102
  %v119 = vpack.c.b16 %v105, %v104
  %v120 = vpack.c.b16 %v107, %v106
  %v121 = vpack.c.b16 %v109, %v108
  %v122 = vpack.c.b16 %v111, %v110
  %v123 = vpack.c.b16 %v113, %v112
  %v124 = vpack.c.b16 %v115, %v114
  %v125 = vpack.c.b16 %v117, %v116
  %134 = vmatpush.bf16.msra.mxu0 %v125
  %135 = vmatpush.bf16.msra.mxu0 %v124
  %136 = vmatpush.bf16.msra.mxu0 %v123
  %137 = vmatpush.bf16.msra.mxu0 %v122
  %138 = vmatpush.bf16.msra.mxu0 %v121
  %139 = vmatpush.bf16.msra.mxu0 %v120
  %140 = vmatpush.bf16.msra.mxu0 %v119
  %141 = vmatpush.bf16.msra.mxu0 %v118
  %142 = vmatmul.bf16.gmra.mxu0 %v65
  %v143 = vpop.f32.mrf.mxu0
  %v144 = vadd.f32 %v84, %v143
  %v145 = vpop.f32.mrf.mxu0
  %146 = vdwg.mxu0
  %v147 = vtanh.pop %v144
  %v148 = vpack.c.bf16 %v147, %v147
  %v149 = vld [vmem:[%s5] sm:$0xf]
  %v150 = vld [vmem:[%s5 + $0x4] sm:$0xf]
  %v151 = vld [vmem:[%s5 + $0x8] sm:$0xf]
  %v152 = vld [vmem:[%s5 + $0xc] sm:$0xf]
  %v153 = vld [vmem:[%s5 + $0x10] sm:$0xf]
  %v154 = vld [vmem:[%s5 + $0x14] sm:$0xf]
  %v155 = vld [vmem:[%s5 + $0x18] sm:$0xf]
  %v156 = vld [vmem:[%s5 + $0x1c] sm:$0xf]
  %v157 = vld [vmem:[%s5 + $0x20] sm:$0xf]
  %v158 = vld [vmem:[%s5 + $0x24] sm:$0xf]
  %v159 = vld [vmem:[%s5 + $0x28] sm:$0xf]
  %v160 = vld [vmem:[%s5 + $0x2c] sm:$0xf]
  %v161 = vld [vmem:[%s5 + $0x30] sm:$0xf]
  %v162 = vld [vmem:[%s5 + $0x34] sm:$0xf]
  %v163 = vld [vmem:[%s5 + $0x38] sm:$0xf]
  %v164 = vld [vmem:[%s5 + $0x3c] sm:$0xf]
  %v165 = vld [vmem:[%s6] sm:$0x1]
  %v167 = vperm.slane %v165, 0
  %v185 = vunpack.c.l.b16 %v149
  %v186 = vunpack.c.l.b16 %v150
  %v187 = vunpack.c.l.b16 %v151
  %v188 = vunpack.c.l.b16 %v152
  %v189 = vunpack.c.l.b16 %v153
  %v190 = vunpack.c.l.b16 %v154
  %v191 = vunpack.c.l.b16 %v155
  %v192 = vunpack.c.l.b16 %v156
  %v193 = vunpack.c.l.b16 %v157
  %v194 = vunpack.c.l.b16 %v158
  %v195 = vunpack.c.l.b16 %v159
  %v196 = vunpack.c.l.b16 %v160
  %v197 = vunpack.c.l.b16 %v161
  %v198 = vunpack.c.l.b16 %v162
  %v199 = vunpack.c.l.b16 %v163
  %v200 = vunpack.c.l.b16 %v164
  %v201 = vpack.c.b16 %v186, %v185
  %v202 = vpack.c.b16 %v188, %v187
  %v203 = vpack.c.b16 %v190, %v189
  %v204 = vpack.c.b16 %v192, %v191
  %v205 = vpack.c.b16 %v194, %v193
  %v206 = vpack.c.b16 %v196, %v195
  %v207 = vpack.c.b16 %v198, %v197
  %v208 = vpack.c.b16 %v200, %v199
  %217 = vmatpush.bf16.msra.mxu0 %v208
  %218 = vmatpush.bf16.msra.mxu0 %v207
  %219 = vmatpush.bf16.msra.mxu0 %v206
  %220 = vmatpush.bf16.msra.mxu0 %v205
  %221 = vmatpush.bf16.msra.mxu0 %v204
  %222 = vmatpush.bf16.msra.mxu0 %v203
  %223 = vmatpush.bf16.msra.mxu0 %v202
  %224 = vmatpush.bf16.msra.mxu0 %v201
  %225 = vmatmul.bf16.gmra.mxu0 %v148
  %v226 = vpop.f32.mrf.mxu0
  %v227 = vadd.f32 %v167, %v226
  %v228 = vpop.f32.mrf.mxu0
  %229 = vdwg.mxu0
  %vm230 = vcmask 23552
  %231 = vst.msk [vmem:[%s7] sm:$0xff] %vm230, %v227
  // Predicated region
  $region30: #{dqn_forward.1} parent=0 // pred_check
    _
  $region31: #{dqn_forward.1} parent=0 // pred_check_branch
    %233 = sbr.rel (0) target = $region33
  $region32: #{dqn_forward.1} parent=0 // pred_region
    _
  $region33: #{dqn_forward.1} parent=0 // pred_fallthru
    _
  // Predicated region
  $region34: #{dqn_forward.1} parent=0 // pred_check
    _
  $region35: #{dqn_forward.1} parent=0 // pred_check_branch
    %235 = sbr.rel (0) target = $region37
  $region36: #{dqn_forward.1} parent=0 // pred_region
    _
  $region37: #{dqn_forward.1} parent=0 // pred_fallthru
    _

</llo_original>
